<compile_context>
chip_gen: v7x
topology: tpu7x:2x2x1
jax: 0.10.0
libtpu: 0.0.40
codegen_flags: <defaults>
</compile_context>

<pallas_src>
import jax
import jax.numpy as jnp
from jax.experimental import pallas as pl
from jax.experimental.pallas import tpu as pltpu


def _pick_d_block(d, cap=8):
    """Depth tile: a multiple of 8 that divides d (<= cap), else the full depth."""
    if d <= cap or d % 8 != 0:
        return d
    blk = (cap // 8) * 8
    while blk >= 8:
        if d % blk == 0:
            return blk
        blk -= 8
    return d


def _pick_hw_block(hw, cap=512):
    """In-plane tile: a multiple of 128 that divides h*w (<= cap), else the full plane."""
    if hw <= cap:
        return hw
    blk = (cap // 128) * 128
    while blk >= 128:
        if hw % blk == 0:
            return blk
        blk -= 128
    return hw


def pe_apply_kernel(x_ref, ad_ref, ahw_ref, w2_ref, b2_ref, o_ref):
    # x_ref  : (1, C, d_blk, T)  input tile, native dtype (lane dim = flattened H*W)
    # ad_ref : (1, D, Cr)        conv1(sq_d) + b1, f32 (tiny, fully resident)
    # ahw_ref: (1, Cr, T)        conv1(sq_h) + conv1(sq_w) for this HW tile, f32
    # w2_ref : (C, Cr)           second 1x1x1 conv weight, f32
    # b2_ref : (C, 1)            second 1x1x1 conv bias, f32
    # o_ref  : (1, C, d_blk, T)  output tile
    C = x_ref.shape[1]
    d_blk = x_ref.shape[2]
    T = x_ref.shape[3]
    Cr = w2_ref.shape[1]

    # Slice the per-depth term for this D-block (sublane-dim dynamic slice of a tiny ref).
    di = pl.program_id(1)
    d0 = pl.multiple_of(di * d_blk, d_blk)
    a_d = ad_ref[0, pl.ds(d0, d_blk), :]          # (d_blk, Cr) f32
    a_hw = ahw_ref[0]                             # (Cr, T)     f32
    w2 = w2_ref[...]                              # (C, Cr)     f32
    b2 = b2_ref[...]                              # (C, 1)      f32

    # Second 1x1x1 conv as unrolled VPU broadcast FMAs over the (tiny) reduced channels.
    # gate_pre[c, d, t] = b2[c] + sum_r w2[c, r] * relu(a_d[d, r] + a_hw[r, t])
    acc = b2[:, :, None]                          # (C, 1, 1) -> broadcasts up on first add
    for r in range(Cr):                           # Cr is a small static Python int
        t1_r = jnp.maximum(a_d[:, r:r + 1] + a_hw[r:r + 1, :], 0.0)      # (d_blk, T)
        acc = acc + w2[:, r:r + 1][:, :, None] * t1_r[None, :, :]        # (C, d_blk, T)
    gate = jax.nn.sigmoid(acc)                    # (C, d_blk, T) f32, EUP

    x = x_ref[0]                                  # keep native dtype (no f32 blow-up)
    o_ref[0] = (x * gate.astype(x.dtype)).astype(o_ref.dtype)


def project_excite_pallas(x, w1, b1, w2, b2, *, d_tile=8, hw_tile=512):
    """x: (B, C, D, H, W).  w1: (Cr, C), b1: (Cr,), w2: (C, Cr), b2: (C,)."""
    B, C, D, H, W = x.shape
    Cr = w1.shape[0]
    HW = H * W
    f32 = jnp.float32

    # ---- "Project" stage + first 1x1x1 conv on the tiny squeeze vectors (XLA glue) ----
    sq_d = jnp.mean(x, axis=(3, 4), dtype=f32)    # (B, C, D)  avg over H, W
    sq_h = jnp.mean(x, axis=(2, 4), dtype=f32)    # (B, C, H)  avg over D, W
    sq_w = jnp.mean(x, axis=(2, 3), dtype=f32)    # (B, C, W)  avg over D, H

    w1f = w1.astype(f32)
    a_d = jnp.einsum('rc,bcd->bdr', w1f, sq_d) + b1.astype(f32)[None, None, :]  # (B, D, Cr)
    a_h = jnp.einsum('rc,bch->brh', w1f, sq_h)                                  # (B, Cr, H)
    a_w = jnp.einsum('rc,bcw->brw', w1f, sq_w)                                  # (B, Cr, W)
    a_hw = (a_h[:, :, :, None] + a_w[:, :, None, :]).reshape(B, Cr, HW)         # (B, Cr, HW)

    w2f = w2.astype(f32)                          # (C, Cr)
    b2f = b2.astype(f32).reshape(C, 1)            # (C, 1)

    # ---- Streaming gate-apply kernel over the native NCDHW layout (free reshape) ----
    x_r = x.reshape(B, C, D, HW)
    d_blk = _pick_d_block(D, d_tile)
    t_hw = _pick_hw_block(HW, hw_tile)
    grid = (B, D // d_blk, HW // t_hw)

    out = pl.pallas_call(
        pe_apply_kernel,
        out_shape=jax.ShapeDtypeStruct((B, C, D, HW), x.dtype),
        grid_spec=pltpu.PrefetchScalarGridSpec(
            num_scalar_prefetch=0,
            grid=grid,
            in_specs=[
                pl.BlockSpec((1, C, d_blk, t_hw), lambda b, di, ti: (b, 0, di, ti)),
                pl.BlockSpec((1, D, Cr), lambda b, di, ti: (b, 0, 0)),
                pl.BlockSpec((1, Cr, t_hw), lambda b, di, ti: (b, 0, ti)),
                pl.BlockSpec((C, Cr), lambda b, di, ti: (0, 0)),
                pl.BlockSpec((C, 1), lambda b, di, ti: (0, 0)),
            ],
            out_specs=pl.BlockSpec((1, C, d_blk, t_hw), lambda b, di, ti: (b, 0, di, ti)),
        ),
        compiler_params=pltpu.CompilerParams(
            dimension_semantics=("parallel", "parallel", "parallel"),
            vmem_limit_bytes=48 * 1024 * 1024,
        ),
    )(x_r, a_d, a_hw, w2f, b2f)

    return out.reshape(B, C, D, H, W)


def project_excite_reference(x, w1, b1, w2, b2):
    """Pure-JAX reference matching the PyTorch forward (NCDHW)."""
    sq_w = jnp.mean(x, axis=(2, 3), keepdims=True)   # (B,C,1,1,W)
    sq_h = jnp.mean(x, axis=(2, 4), keepdims=True)   # (B,C,1,H,1)
    sq_d = jnp.mean(x, axis=(3, 4), keepdims=True)   # (B,C,D,1,1)
    z = sq_w + sq_h + sq_d                           # (B,C,D,H,W)
    y1 = jnp.einsum('rc,bcdhw->brdhw', w1, z) + b1[None, :, None, None, None]
    y1 = jax.nn.relu(y1)
    y2 = jnp.einsum('cr,brdhw->bcdhw', w2, y1) + b2[None, :, None, None, None]
    return x * jax.nn.sigmoid(y2)


if __name__ == "__main__":
    B, C, D, H, W = 2, 4, 8, 16, 16
    reduction_ratio = 2
    Cr = C // reduction_ratio

    key = jax.random.PRNGKey(0)
    kx, k1, k2, k3, k4 = jax.random.split(key, 5)

    x = jax.random.normal(kx, (B, C, D, H, W), dtype=jnp.float32)
    # conv_c:  Conv3d(C -> Cr, k=1)  => weight (Cr, C), bias (Cr,)
    # conv_cT: Conv3d(Cr -> C, k=1)  => weight (C, Cr), bias (C,)
    w1 = jax.random.normal(k1, (Cr, C), dtype=jnp.float32) * 0.5
    b1 = jax.random.normal(k2, (Cr,), dtype=jnp.float32) * 0.1
    w2 = jax.random.normal(k3, (C, Cr), dtype=jnp.float32) * 0.5
    b2 = jax.random.normal(k4, (C,), dtype=jnp.float32) * 0.1

    out = project_excite_pallas(x, w1, b1, w2, b2)
    out = jax.block_until_ready(out)

    ref = project_excite_reference(x, w1, b1, w2, b2)
    assert out.shape == (B, C, D, H, W)
    assert jnp.allclose(out, ref, atol=1e-5, rtol=1e-5), "mismatch vs reference"

    print("KERNEL_OK")
</pallas_src>

<mosaic_0001>
module attributes {stable_mosaic.version = 11 : i64} {
  func.func @pe_apply_kernel(%arg0: i32, %arg1: i32, %arg2: i32, %arg3: memref<1x4x8x256xf32, #tpu.memory_space<vmem>>, %arg4: memref<1x8x2xf32, #tpu.memory_space<vmem>>, %arg5: memref<1x2x256xf32, #tpu.memory_space<vmem>>, %arg6: memref<4x2xf32, #tpu.memory_space<vmem>>, %arg7: memref<4x1xf32, #tpu.memory_space<vmem>>, %arg8: memref<1x4x8x256xf32, #tpu.memory_space<vmem>>) attributes {dimension_semantics = [#tpu.dimension_semantics<parallel>, #tpu.dimension_semantics<parallel>, #tpu.dimension_semantics<parallel>], iteration_bounds = array<i64: 2, 1, 1>, scalar_prefetch = 0 : i64, scratch_operands = 0 : i64, tpu.core_type = #tpu.core_type<tc>, window_params = [{transform_indices = @transform_0, window_bounds = array<i64: 1, 4, 8, 256>}, {transform_indices = @transform_1, window_bounds = array<i64: 1, 8, 2>}, {transform_indices = @transform_2, window_bounds = array<i64: 1, 2, 256>}, {pipeline_mode = #tpu.pipeline_mode<synchronous>, transform_indices = @transform_3, window_bounds = array<i64: 4, 2>}, {pipeline_mode = #tpu.pipeline_mode<synchronous>, transform_indices = @transform_4, window_bounds = array<i64: 4, 1>}, {transform_indices = @transform_5, window_bounds = array<i64: 1, 4, 8, 256>}]} {
    %c8_i32 = arith.constant 8 : i32
    %0 = arith.muli %arg1, %c8_i32 : i32
    %1 = tpu.assume_multiple %0, 8 : i32
    %c0 = arith.constant 0 : index
    %2 = arith.index_cast %1 : i32 to index
    %c0_0 = arith.constant 0 : index
    %3 = vector.load %arg4[%c0, %2, %c0_0] : memref<1x8x2xf32, #tpu.memory_space<vmem>>, vector<1x8x2xf32>
    %4 = vector.shape_cast %3 : vector<1x8x2xf32> to vector<8x2xf32>
    %c0_1 = arith.constant 0 : index
    %c0_2 = arith.constant 0 : index
    %c0_3 = arith.constant 0 : index
    %5 = vector.load %arg5[%c0_1, %c0_2, %c0_3] : memref<1x2x256xf32, #tpu.memory_space<vmem>>, vector<1x2x256xf32>
    %6 = vector.shape_cast %5 : vector<1x2x256xf32> to vector<2x256xf32>
    %c0_4 = arith.constant 0 : index
    %c0_5 = arith.constant 0 : index
    %7 = vector.load %arg6[%c0_4, %c0_5] : memref<4x2xf32, #tpu.memory_space<vmem>>, vector<4x2xf32>
    %c0_6 = arith.constant 0 : index
    %c0_7 = arith.constant 0 : index
    %8 = vector.load %arg7[%c0_6, %c0_7] : memref<4x1xf32, #tpu.memory_space<vmem>>, vector<4x1xf32>
    %9 = vector.shape_cast %8 : vector<4x1xf32> to vector<4x1x1xf32>
    %10 = vector.extract_strided_slice %4 {offsets = [0, 0], sizes = [8, 1], strides = [1, 1]} : vector<8x2xf32> to vector<8x1xf32>
    %11 = vector.extract_strided_slice %6 {offsets = [0, 0], sizes = [1, 256], strides = [1, 1]} : vector<2x256xf32> to vector<1x256xf32>
    %12 = vector.broadcast %10 : vector<8x1xf32> to vector<8x256xf32>
    %13 = vector.broadcast %11 : vector<1x256xf32> to vector<8x256xf32>
    %14 = arith.addf %12, %13 : vector<8x256xf32>
    %cst = arith.constant 0.000000e+00 : f32
    %15 = vector.broadcast %cst : f32 to vector<8x256xf32>
    %16 = arith.maximumf %14, %15 : vector<8x256xf32>
    %17 = vector.extract_strided_slice %7 {offsets = [0, 0], sizes = [4, 1], strides = [1, 1]} : vector<4x2xf32> to vector<4x1xf32>
    %18 = vector.shape_cast %17 : vector<4x1xf32> to vector<4x1x1xf32>
    %19 = vector.shape_cast %16 : vector<8x256xf32> to vector<1x8x256xf32>
    %20 = vector.broadcast %18 : vector<4x1x1xf32> to vector<4x8x256xf32>
    %21 = vector.broadcast %19 : vector<1x8x256xf32> to vector<4x8x256xf32>
    %22 = arith.mulf %20, %21 : vector<4x8x256xf32>
    %23 = vector.broadcast %9 : vector<4x1x1xf32> to vector<4x8x256xf32>
    %24 = arith.addf %23, %22 : vector<4x8x256xf32>
    %25 = vector.extract_strided_slice %4 {offsets = [0, 1], sizes = [8, 1], strides = [1, 1]} : vector<8x2xf32> to vector<8x1xf32>
    %26 = vector.extract_strided_slice %6 {offsets = [1, 0], sizes = [1, 256], strides = [1, 1]} : vector<2x256xf32> to vector<1x256xf32>
    %27 = vector.broadcast %25 : vector<8x1xf32> to vector<8x256xf32>
    %28 = vector.broadcast %26 : vector<1x256xf32> to vector<8x256xf32>
    %29 = arith.addf %27, %28 : vector<8x256xf32>
    %cst_8 = arith.constant 0.000000e+00 : f32
    %30 = vector.broadcast %cst_8 : f32 to vector<8x256xf32>
    %31 = arith.maximumf %29, %30 : vector<8x256xf32>
    %32 = vector.extract_strided_slice %7 {offsets = [0, 1], sizes = [4, 1], strides = [1, 1]} : vector<4x2xf32> to vector<4x1xf32>
    %33 = vector.shape_cast %32 : vector<4x1xf32> to vector<4x1x1xf32>
    %34 = vector.shape_cast %31 : vector<8x256xf32> to vector<1x8x256xf32>
    %35 = vector.broadcast %33 : vector<4x1x1xf32> to vector<4x8x256xf32>
    %36 = vector.broadcast %34 : vector<1x8x256xf32> to vector<4x8x256xf32>
    %37 = arith.mulf %35, %36 : vector<4x8x256xf32>
    %38 = arith.addf %24, %37 : vector<4x8x256xf32>
    %39 = arith.negf %38 : vector<4x8x256xf32>
    %40 = math.exp %39 : vector<4x8x256xf32>
    %cst_9 = arith.constant 1.000000e+00 : f32
    %41 = vector.broadcast %cst_9 : f32 to vector<4x8x256xf32>
    %42 = arith.addf %41, %40 : vector<4x8x256xf32>
    %43 = arith.divf %41, %42 : vector<4x8x256xf32>
    %c0_10 = arith.constant 0 : index
    %c0_11 = arith.constant 0 : index
    %c0_12 = arith.constant 0 : index
    %c0_13 = arith.constant 0 : index
    %44 = vector.load %arg3[%c0_10, %c0_11, %c0_12, %c0_13] : memref<1x4x8x256xf32, #tpu.memory_space<vmem>>, vector<1x4x8x256xf32>
    %45 = vector.shape_cast %44 : vector<1x4x8x256xf32> to vector<4x8x256xf32>
    %46 = arith.mulf %45, %43 : vector<4x8x256xf32>
    %c0_14 = arith.constant 0 : index
    %c0_15 = arith.constant 0 : index
    %c0_16 = arith.constant 0 : index
    %c0_17 = arith.constant 0 : index
    %47 = vector.load %arg8[%c0_14, %c0_15, %c0_16, %c0_17] : memref<1x4x8x256xf32, #tpu.memory_space<vmem>>, vector<1x4x8x256xf32>
    %48 = vector.shape_cast %47 : vector<1x4x8x256xf32> to vector<4x8x256xf32>
    %49 = vector.shape_cast %46 : vector<4x8x256xf32> to vector<1x4x8x256xf32>
    tpu.vector_store %arg8[%c0_14, %c0_15, %c0_16, %c0_17], %49 {strides = array<i32>} : memref<1x4x8x256xf32, #tpu.memory_space<vmem>>, vector<1x4x8x256xf32>,
    return
  }
  func.func @transform_0(%arg0: i32, %arg1: i32, %arg2: i32) -> (i32, i32, i32, i32) {
    %c0_i32 = arith.constant 0 : i32
    %c0_i32_0 = arith.constant 0 : i32
    return %arg0, %c0_i32, %arg1, %arg2 : i32, i32, i32, i32
  }
  func.func @transform_1(%arg0: i32, %arg1: i32, %arg2: i32) -> (i32, i32, i32) {
    %c0_i32 = arith.constant 0 : i32
    %c0_i32_0 = arith.constant 0 : i32
    %c0_i32_1 = arith.constant 0 : i32
    return %arg0, %c0_i32, %c0_i32_0 : i32, i32, i32
  }
  func.func @transform_2(%arg0: i32, %arg1: i32, %arg2: i32) -> (i32, i32, i32) {
    %c0_i32 = arith.constant 0 : i32
    %c0_i32_0 = arith.constant 0 : i32
    return %arg0, %c0_i32, %arg2 : i32, i32, i32
  }
  func.func @transform_3(%arg0: i32, %arg1: i32, %arg2: i32) -> (i32, i32) {
    %c0_i32 = arith.constant 0 : i32
    %c0_i32_0 = arith.constant 0 : i32
    %c0_i32_1 = arith.constant 0 : i32
    return %c0_i32, %c0_i32_0 : i32, i32
  }
  func.func @transform_4(%arg0: i32, %arg1: i32, %arg2: i32) -> (i32, i32) {
    %c0_i32 = arith.constant 0 : i32
    %c0_i32_0 = arith.constant 0 : i32
    %c0_i32_1 = arith.constant 0 : i32
    return %c0_i32, %c0_i32_0 : i32, i32
  }
  func.func @transform_5(%arg0: i32, %arg1: i32, %arg2: i32) -> (i32, i32, i32, i32) {
    %c0_i32 = arith.constant 0 : i32
    %c0_i32_0 = arith.constant 0 : i32
    return %arg0, %c0_i32, %arg1, %arg2 : i32, i32, i32, i32
  }
}

</mosaic_0001>

<llo_original>
// kernel: tpu_custom_call.1
$region0: #{tpu_custom_call.1}
  #allocation0 [shape = 'u32[]', space=smem, size = 0x4, offset = 0x4, fixed_abs, tag = 'smem constant byte address 0x4 - core index']
  #allocation1 [shape = 'u32[144,128]{1,0:T(1,128)}', space=vmem, size = 0x12000, scoped, tag = 'internal scratch']
  %s0 = inlined_call_operand.hbm [shape: f32[2,4,8,256], index: 0, kind: input, shape index: {}]
  %s1 = inlined_call_operand.vmem [shape: f32[2,8,2], index: 1, kind: input, shape index: {}]
  %s2 = inlined_call_operand.vmem [shape: f32[2,2,256], index: 2, kind: input, shape index: {}]
  %s3 = inlined_call_operand.vmem [shape: f32[4,2], index: 3, kind: input, shape index: {}]
  %s4 = inlined_call_operand.vmem [shape: f32[4,1], index: 4, kind: input, shape index: {}]
  %s5 = inlined_call_operand.hbm [shape: f32[2,4,8,256], index: 5, kind: output, shape index: {}]
  %s6 = sld [smem:[#allocation0]]
  $region57: #{tpu_custom_call.1} parent=0
    _
  %s8 = ssub.s32 1, %s6
  %s9 = scalar_select 0, %s8, %s6
  $region1: #{tpu_custom_call.1} parent=0
    #allocation2 [shape = 'u8[65536]{0}', space=vmem, size = 0x10000, scoped, tag = 'input window, operand 0']
    #allocation3 [shape = 's32[2]{0}', space=sflag, size = 0x8, scoped, tag = 'scoped memory for tpu_custom_call.1']
    #allocation4 [shape = 's32[2]{0}', space=sflag, size = 0x8, scoped, tag = 'scoped memory for tpu_custom_call.1']
    #allocation5 [shape = 'u8[65536]{0}', space=vmem, size = 0x10000, scoped, tag = 'output window, operand 0']
    %10 = vsyncpa [#allocation3], 0
    %s11 = scalar_lea.sflag [#allocation3], 1
    %12 = vsyncpa %s11, 0
    %13 = vsyncpa [#allocation4], 0
    %s14 = scalar_lea.sflag [#allocation4], 1
    %15 = vsyncpa %s14, 0
    loop: start=0, step=1, limit=4
    $region2: #{tpu_custom_call.1} parent=1 // loop_pre_header
      _
    $region3: #{tpu_custom_call.1} parent=1 // loop_header
      %s17 = sphi 0, %s21
      %p18 = scmp.ge.s32.totalorder %s17, 4
      %s24 = sphi 0, %s43
      %s25 = sphi 0, %s39
      %s26 = sphi 0, %s35
      %s27 = sphi 0, %s24
      %s28 = sphi 0, %s25
      %s29 = sphi 0, %s26
      %s30 = sphi 0, %s27
      %s31 = sphi 0, %s28
      %s32 = sphi 0, %s29
      %s50 = sphi 0, %s52
      %s53 = sphi 0, %s50
      %s54 = sphi 0, %s53
      %s70 = sphi 0, %s54
      %s76 = sphi 0, %s78
      %s79 = sphi 0, %s76
      %s80 = sphi 0, %s79
      %s96 = sphi 0, %s80
      %s104 = sphi 0, %s106
      %s107 = sphi 0, %s104
      %s108 = sphi 0, %s107
      %s124 = sphi 0, %s108
      %s128 = sphi 0, %s128
      %s130 = sphi 0, %s128
      %s131 = sphi 0, %s130
      %s145 = sphi 0, %s131
      %s149 = sphi 0, %s149
      %s151 = sphi 0, %s149
      %s152 = sphi 0, %s151
      %s166 = sphi 0, %s152
      %s176 = sphi 0, %s178
      %s179 = sphi 0, %s176
      %s180 = sphi 0, %s179
      %s196 = sphi 0, %s180
    $region4: #{tpu_custom_call.1} parent=1 // loop_header_branch
      %20 = sbr.rel (%p18) target = $region8
    $region5: #{tpu_custom_call.1} parent=1 // loop_body
      %s22 = ssub.s32 %s17, 1
      %s23 = ssub.s32 %s17, 2
      %s33 = sadd.s32 1, %s26
      %p34 = scmp.ge.s32.totalorder %s33, 1
      %s35 = scalar_select %p34, 0, %s33
      %s36 = sadd.s32 1, %s25
      %s37 = scalar_select %p34, %s36, %s25
      %p38 = scmp.ge.s32.totalorder %s37, 1
      %s39 = scalar_select %p38, 0, %s37
      %s40 = sadd.s32 1, %s24
      %s41 = scalar_select %p38, %s40, %s24
      %p42 = scmp.ge.s32.totalorder %s41, 2
      %s43 = scalar_select %p42, 0, %s41
      %s44 = ssub.s32 %s24, %s43
      %s45 = ssub.s32 %s25, %s39
      %s46 = sor.u32 %s44, %s45
      %s47 = ssub.s32 %s26, %s35
      %s48 = sor.u32 %s46, %s47
      %p49 = scmp.eq.s32.totalorder %s48, 0
      %s51 = sadd.s32 %s50, 1
      %s52 = scalar_select %p49, %s50, %s51
      %p55 = pneg %p49
      %p56 = scmp.eq.s32.totalorder %s17, 1
      %p57 = por %p55, %p56
      %p58 = scmp.ne.s32.totalorder %s50, %s53
      %p59 = scmp.eq.s32.totalorder %s17, 0
      %p60 = por %p58, %p59
      %p61 = scmp.ne.s32.totalorder %s50, %s53
      %p62 = scmp.eq.s32.totalorder %s22, 1
      %p63 = por %p61, %p62
      %p64 = scmp.ne.s32.totalorder %s53, %s54
      %p65 = scmp.eq.s32.totalorder %s22, 0
      %p66 = por %p64, %p65
      %p67 = scmp.ne.s32.totalorder %s53, %s54
      %p68 = scmp.eq.s32.totalorder %s23, 1
      %p69 = por %p67, %p68
      %p71 = scmp.ne.s32.totalorder %s54, %s70
      %p72 = scmp.eq.s32.totalorder %s23, 0
      %p73 = por %p71, %p72
      %s74 = ssub.s32 %s24, %s43
      %p75 = scmp.eq.s32.totalorder %s74, 0
      %s77 = sadd.s32 %s76, 1
      %s78 = scalar_select %p75, %s76, %s77
      %p81 = pneg %p75
      %p82 = scmp.eq.s32.totalorder %s17, 1
      %p83 = por %p81, %p82
      %p84 = scmp.ne.s32.totalorder %s76, %s79
      %p85 = scmp.eq.s32.totalorder %s17, 0
      %p86 = por %p84, %p85
      %p87 = scmp.ne.s32.totalorder %s76, %s79
      %p88 = scmp.eq.s32.totalorder %s22, 1
      %p89 = por %p87, %p88
      %p90 = scmp.ne.s32.totalorder %s79, %s80
      %p91 = scmp.eq.s32.totalorder %s22, 0
      %p92 = por %p90, %p91
      %p93 = scmp.ne.s32.totalorder %s79, %s80
      %p94 = scmp.eq.s32.totalorder %s23, 1
      %p95 = por %p93, %p94
      %p97 = scmp.ne.s32.totalorder %s80, %s96
      %p98 = scmp.eq.s32.totalorder %s23, 0
      %p99 = por %p97, %p98
      %s100 = ssub.s32 %s24, %s43
      %s101 = ssub.s32 %s26, %s35
      %s102 = sor.u32 %s100, %s101
      %p103 = scmp.eq.s32.totalorder %s102, 0
      %s105 = sadd.s32 %s104, 1
      %s106 = scalar_select %p103, %s104, %s105
      %p109 = pneg %p103
      %p110 = scmp.eq.s32.totalorder %s17, 1
      %p111 = por %p109, %p110
      %p112 = scmp.ne.s32.totalorder %s104, %s107
      %p113 = scmp.eq.s32.totalorder %s17, 0
      %p114 = por %p112, %p113
      %p115 = scmp.ne.s32.totalorder %s104, %s107
      %p116 = scmp.eq.s32.totalorder %s22, 1
      %p117 = por %p115, %p116
      %p118 = scmp.ne.s32.totalorder %s107, %s108
      %p119 = scmp.eq.s32.totalorder %s22, 0
      %p120 = por %p118, %p119
      %p121 = scmp.ne.s32.totalorder %s107, %s108
      %p122 = scmp.eq.s32.totalorder %s23, 1
      %p123 = por %p121, %p122
      %p125 = scmp.ne.s32.totalorder %s108, %s124
      %p126 = scmp.eq.s32.totalorder %s23, 0
      %p127 = por %p125, %p126
      %s129 = sadd.s32 %s128, 1
      %p132 = scmp.eq.s32.totalorder %s17, 1
      %p133 = scmp.ne.s32.totalorder %s128, %s130
      %p134 = scmp.eq.s32.totalorder %s17, 0
      %p135 = por %p133, %p134
      %p136 = scmp.ne.s32.totalorder %s128, %s130
      %p137 = scmp.eq.s32.totalorder %s22, 1
      %p138 = por %p136, %p137
      %p139 = scmp.ne.s32.totalorder %s130, %s131
      %p140 = scmp.eq.s32.totalorder %s22, 0
      %p141 = por %p139, %p140
      %p142 = scmp.ne.s32.totalorder %s130, %s131
      %p143 = scmp.eq.s32.totalorder %s23, 1
      %p144 = por %p142, %p143
      %p146 = scmp.ne.s32.totalorder %s131, %s145
      %p147 = scmp.eq.s32.totalorder %s23, 0
      %p148 = por %p146, %p147
      %s150 = sadd.s32 %s149, 1
      %p153 = scmp.eq.s32.totalorder %s17, 1
      %p154 = scmp.ne.s32.totalorder %s149, %s151
      %p155 = scmp.eq.s32.totalorder %s17, 0
      %p156 = por %p154, %p155
      %p157 = scmp.ne.s32.totalorder %s149, %s151
      %p158 = scmp.eq.s32.totalorder %s22, 1
      %p159 = por %p157, %p158
      %p160 = scmp.ne.s32.totalorder %s151, %s152
      %p161 = scmp.eq.s32.totalorder %s22, 0
      %p162 = por %p160, %p161
      %p163 = scmp.ne.s32.totalorder %s151, %s152
      %p164 = scmp.eq.s32.totalorder %s23, 1
      %p165 = por %p163, %p164
      %p167 = scmp.ne.s32.totalorder %s152, %s166
      %p168 = scmp.eq.s32.totalorder %s23, 0
      %p169 = por %p167, %p168
      %s170 = ssub.s32 %s24, %s43
      %s171 = ssub.s32 %s25, %s39
      %s172 = sor.u32 %s170, %s171
      %s173 = ssub.s32 %s26, %s35
      %s174 = sor.u32 %s172, %s173
      %p175 = scmp.eq.s32.totalorder %s174, 0
      %s177 = sadd.s32 %s176, 1
      %s178 = scalar_select %p175, %s176, %s177
      %p181 = pneg %p175
      %p182 = scmp.eq.s32.totalorder %s17, 1
      %p183 = por %p181, %p182
      %p184 = scmp.ne.s32.totalorder %s176, %s179
      %p185 = scmp.eq.s32.totalorder %s17, 0
      %p186 = por %p184, %p185
      %p187 = scmp.ne.s32.totalorder %s176, %s179
      %p188 = scmp.eq.s32.totalorder %s22, 1
      %p189 = por %p187, %p188
      %p190 = scmp.ne.s32.totalorder %s179, %s180
      %p191 = scmp.eq.s32.totalorder %s22, 0
      %p192 = por %p190, %p191
      %p193 = scmp.ne.s32.totalorder %s179, %s180
      %p194 = scmp.eq.s32.totalorder %s23, 1
      %p195 = por %p193, %p194
      %p197 = scmp.ne.s32.totalorder %s180, %s196
      %p198 = scmp.eq.s32.totalorder %s23, 0
      %p199 = por %p197, %p198
      %p200 = scmp.le.s32.totalorder 1, %s17
      %p201 = scmp.lt.s32.totalorder %s17, 3
      %p202 = pnand %p200, %p201
      %p203 = pneg %p202
      // Predicated region
      $region9: #{tpu_custom_call.1} parent=5 // pred_check
        _
      $region10: #{tpu_custom_call.1} parent=5 // pred_check_branch
        %205 = sbr.rel (%p202) target = $region12
      $region11: #{tpu_custom_call.1} parent=5 // pred_region
        %s206 = ssub.s32 %s17, 1
        // Predicated region
        $region13: #{tpu_custom_call.1} parent=11 // pred_check
          %p207 = pneg %p141
        $region14: #{tpu_custom_call.1} parent=11 // pred_check_branch
          %209 = sbr.rel (%p207) target = $region16
        $region15: #{tpu_custom_call.1} parent=11 // pred_region
          _
        $region16: #{tpu_custom_call.1} parent=11 // pred_fallthru
          _
        // Predicated region
        $region17: #{tpu_custom_call.1} parent=11 // pred_check
          %p210 = pneg %p162
        $region18: #{tpu_custom_call.1} parent=11 // pred_check_branch
          %212 = sbr.rel (%p210) target = $region20
        $region19: #{tpu_custom_call.1} parent=11 // pred_region
          _
        $region20: #{tpu_custom_call.1} parent=11 // pred_fallthru
          _
      $region12: #{tpu_custom_call.1} parent=5 // pred_fallthru
        _
      %p213 = scmp.lt.s32.totalorder %s17, 2
      // Predicated region
      $region21: #{tpu_custom_call.1} parent=5 // pred_check
        %p214 = pneg %p213
      $region22: #{tpu_custom_call.1} parent=5 // pred_check_branch
        %216 = sbr.rel (%p214) target = $region24
      $region23: #{tpu_custom_call.1} parent=5 // pred_region
        // Predicated region
        $region25: #{tpu_custom_call.1} parent=23 // pred_check
          %p217 = pneg %p60
        $region26: #{tpu_custom_call.1} parent=23 // pred_check_branch
          %219 = sbr.rel (%p217) target = $region28
        $region27: #{tpu_custom_call.1} parent=23 // pred_region
          %s220 = sand.u32 %s50, 1
          %s221 = scalar_lea.sflag [#allocation3], %s220
          %s222 = sand.u32 %s50, 1
          %s223 = smul.addr %s222, 64
          %s224 = scalar_lea.vmem [#allocation2], %s223
          %s225 = smul.u32 2, %s26
          %s227 = ssub.s32 1024, 1024
          %228 = vsyncadd %s221, %s227
          %s229 = smul.addr %s25, 2
          %s230 = sadd.s32 %s225, %s229
          %s231 = smul.addr %s24, 8
          %s232 = sadd.s32 %s230, %s231
          %s233 = smul.addr %s232, 128
          %s234 = scalar_lea.hbm %s0, %s233
          %s235 = sshll.u32 %s224, 4
          %s236 = int_to_ptr.vmem [resolvable:$true] %s235
          %241 = dma.hbm_to_vmem [thread:$0]  %s234, 1024, %s236, %s221, 256, 256, 16
        $region28: #{tpu_custom_call.1} parent=23 // pred_fallthru
          _
        // Predicated region
        $region29: #{tpu_custom_call.1} parent=23 // pred_check
          %p242 = pneg %p86
        $region30: #{tpu_custom_call.1} parent=23 // pred_check_branch
          %244 = sbr.rel (%p242) target = $region32
        $region31: #{tpu_custom_call.1} parent=23 // pred_region
          %p245 = scmp.lt.s32.totalorder %s24, 1
          %s246 = scalar_select %p245, %s24, 1
          %s247 = smul.addr %s246, 8
          %s248 = scalar_lea.vmem %s1, %s247
        $region32: #{tpu_custom_call.1} parent=23 // pred_fallthru
          _
        // Predicated region
        $region33: #{tpu_custom_call.1} parent=23 // pred_check
          %p249 = pneg %p114
        $region34: #{tpu_custom_call.1} parent=23 // pred_check_branch
          %251 = sbr.rel (%p249) target = $region36
        $region35: #{tpu_custom_call.1} parent=23 // pred_region
          %s252 = smul.u32 2, %s26
          %p253 = scmp.lt.s32.totalorder %s24, 1
          %s254 = scalar_select %p253, %s24, 1
          %p255 = scmp.lt.s32.totalorder %s252, 1
          %s256 = scalar_select %p255, %s252, 1
          %s257 = smul.addr %s254, 2
          %s258 = sadd.s32 %s256, %s257
          %s259 = smul.addr %s258, 2
          %s260 = scalar_lea.vmem %s2, %s259
          %s261 = smul.u32 2, %s26
        $region36: #{tpu_custom_call.1} parent=23 // pred_fallthru
          _
      $region24: #{tpu_custom_call.1} parent=5 // pred_fallthru
        _
      %p262 = scmp.le.s32.totalorder 1, %s17
      %p263 = scmp.lt.s32.totalorder %s17, 3
      %p264 = pnand %p262, %p263
      %p265 = pneg %p264
      // Predicated region
      $region37: #{tpu_custom_call.1} parent=5 // pred_check
        _
      $region38: #{tpu_custom_call.1} parent=5 // pred_check_branch
        %267 = sbr.rel (%p264) target = $region40
      $region39: #{tpu_custom_call.1} parent=5 // pred_region
        %s268 = ssub.s32 %s17, 1
        %s269 = sand.u32 %s53, 1
        %s270 = scalar_lea.sflag [#allocation3], %s269
        %s271 = sand.u32 %s53, 1
        %s272 = smul.addr %s271, 64
        %s273 = scalar_lea.vmem [#allocation2], %s272
        // Predicated region
        $region41: #{tpu_custom_call.1} parent=39 // pred_check
          %p274 = pneg %p66
        $region42: #{tpu_custom_call.1} parent=39 // pred_check_branch
          %276 = sbr.rel (%p274) target = $region44
        $region43: #{tpu_custom_call.1} parent=39 // pred_region
          %277 = dma.done %s270, 1024
        $region44: #{tpu_custom_call.1} parent=39 // pred_fallthru
          _
        %s278 = sand.u32 %s53, 1
        %s279 = scalar_lea.sflag [#allocation3], %s278
        %s280 = sand.u32 %s53, 1
        %s281 = smul.addr %s280, 64
        %s282 = scalar_lea.vmem [#allocation2], %s281
        %p283 = pneg %p66
        %p284 = pneg %p63
        %p285 = scmp.lt.s32.totalorder %s27, 1
        %s286 = scalar_select %p285, %s27, 1
        %s287 = smul.addr %s286, 8
        %s288 = scalar_lea.vmem %s1, %s287
        %p289 = pneg %p92
        %p290 = pneg %p89
        %s291 = smul.u32 2, %s29
        %p292 = scmp.lt.s32.totalorder %s27, 1
        %s293 = scalar_select %p292, %s27, 1
        %p294 = scmp.lt.s32.totalorder %s291, 1
        %s295 = scalar_select %p294, %s291, 1
        %s296 = smul.addr %s293, 2
        %s297 = sadd.s32 %s295, %s296
        %s298 = smul.addr %s297, 2
        %s299 = scalar_lea.vmem %s2, %s298
        %p300 = pneg %p120
        %p301 = pneg %p117
        %p302 = pneg %p141
        %p303 = pneg %p138
        %p304 = pneg %p162
        %p305 = pneg %p159
        %p306 = pneg %p192
        %p307 = pneg %p189
        %s308 = sand.u32 %s179, 1
        %s309 = scalar_lea.sflag [#allocation4], %s308
        %s310 = sand.u32 %s179, 1
        %s311 = smul.addr %s310, 64
        %s312 = scalar_lea.vmem [#allocation5], %s311
        %s313 = smul.u32 2, %s29
        %p314 = scmp.lt.s32.totalorder %s27, 1
        %s315 = scalar_select %p314, %s27, 1
        %s316 = smul.addr %s315, 8
        %s317 = scalar_lea.vmem %s1, %s316
        %s318 = smul.u32 2, %s29
        %p319 = scmp.lt.s32.totalorder %s27, 1
        %s320 = scalar_select %p319, %s27, 1
        %p321 = scmp.lt.s32.totalorder %s318, 1
        %s322 = scalar_select %p321, %s318, 1
        %s323 = smul.addr %s320, 2
        %s324 = sadd.s32 %s322, %s323
        %s325 = smul.addr %s324, 2
        %s326 = scalar_lea.vmem %s2, %s325
        %s327 = smul.u32 2, %s29
        %s328 = smul.u32 2, %s29
        %s329 = smul.u32 %s28, 8
        %s330 = scalar_lea.vmem %s317, %s329
        %v331 = vld [vmem:[%s330] sm:$0xff]
        %v332 = vld [vmem:[%s326] sm:$0xf]
        %v333 = vld [vmem:[%s3] sm:$0xf]
        %v334 = vld [vmem:[%s4] sm:$0xf]
        %v337 = vunpack.c.l.s4 1966171168
        %v338 = vunpack.c.0.s8 %v337
        %v339 = vlaneseq
        %v340 = vshrl.u32 %v339, 7
        %v341 = vsub.s32 %v338, %v340
        %v342 = vrot.slane %v334, %v341
        %v343 = vcombine.high %v342, %v342
        %v345 = vunpack.c.l.s4 1966171168
        %v346 = vunpack.c.0.s8 %v345
        %v347 = vlaneseq
        %v348 = vshrl.u32 %v347, 7
        %v349 = vsub.s32 %v346, %v348
        %v350 = vrot.slane %v342, %v349
        %v352 = vunpack.c.l.s4 1966171168
        %v353 = vunpack.c.0.s8 %v352
        %v354 = vlaneseq
        %v355 = vshrl.u32 %v354, 7
        %v356 = vsub.s32 %v353, %v355
        %v357 = vrot.slane %v343, %v356
        %v358 = vcombine.high %v350, %v350
        %v359 = vcombine.high %v357, %v357
        %361 = vset.pattern.permute.xlu0 0
        %362 = vperm.xlu0 %361, %v331
        %v363 = vpop.permute.xlu0 %362
        %v366 = vlaneseq
        %v367 = vshrl.u32 %v366, 7
        %v368 = vsub.s32 0, %v367
        %v369 = vrot.slane %v332, %v368
        %v370 = vlaneseq
        %v371 = vshrl.u32 %v370, 7
        %v372 = vsub.s32 2, %v371
        %v373 = vrot.slane %v332, %v372
        %v376 = vlaneseq
        %v377 = vshrl.u32 %v376, 7
        %v378 = vsub.s32 0, %v377
        %v379 = vrot.slane %v369, %v378
        %v380 = vlaneseq
        %v381 = vshrl.u32 %v380, 7
        %v382 = vsub.s32 0, %v381
        %v383 = vrot.slane %v373, %v382
        %v384 = vadd.f32 %v363, %v379
        %v385 = vadd.f32 %v363, %v383
        %v386 = vmax.f32 %v384, 0.0
        %v387 = vmax.f32 %v385, 0.0
        %v390 = vunpack.c.l.s4 1966171168
        %v391 = vunpack.c.0.s8 %v390
        %v392 = vlaneseq
        %v393 = vshrl.u32 %v392, 7
        %v394 = vsub.s32 %v391, %v393
        %v395 = vrot.slane %v333, %v394
        %v396 = vcombine.high %v395, %v395
        %v398 = vunpack.c.l.s4 1966171168
        %v399 = vunpack.c.0.s8 %v398
        %v400 = vlaneseq
        %v401 = vshrl.u32 %v400, 7
        %v402 = vsub.s32 %v399, %v401
        %v403 = vrot.slane %v395, %v402
        %v405 = vunpack.c.l.s4 1966171168
        %v406 = vunpack.c.0.s8 %v405
        %v407 = vlaneseq
        %v408 = vshrl.u32 %v407, 7
        %v409 = vsub.s32 %v406, %v408
        %v410 = vrot.slane %v396, %v409
        %v411 = vcombine.high %v403, %v403
        %v412 = vcombine.high %v410, %v410
        %v413 = vlaneseq
        %v414 = vshrl.u32 %v413, 7
        %v415 = vsub.s32 0, %v414
        %v416 = vrot.slane %v403, %v415
        %v417 = vlaneseq
        %v418 = vshrl.u32 %v417, 7
        %v419 = vsub.s32 0, %v418
        %v420 = vrot.slane %v410, %v419
        %v421 = vlaneseq
        %v422 = vshrl.u32 %v421, 7
        %v423 = vsub.s32 0, %v422
        %v424 = vrot.slane %v411, %v423
        %v425 = vlaneseq
        %v426 = vshrl.u32 %v425, 7
        %v427 = vsub.s32 0, %v426
        %v428 = vrot.slane %v412, %v427
        %429 = vset.pattern.permute.xlu0 0
        %430 = vperm.xlu0 %429, %v416
        %v431 = vpop.permute.xlu0 %430
        %433 = vset.pattern.permute.xlu0 0
        %434 = vperm.xlu0 %433, %v420
        %v435 = vpop.permute.xlu0 %434
        %437 = vset.pattern.permute.xlu0 0
        %438 = vperm.xlu0 %437, %v424
        %v439 = vpop.permute.xlu0 %438
        %441 = vset.pattern.permute.xlu0 0
        %442 = vperm.xlu0 %441, %v428
        %v443 = vpop.permute.xlu0 %442
        %v445 = vmul.f32 %v431, %v386
        %v446 = vmul.f32 %v431, %v387
        %v447 = vmul.f32 %v435, %v386
        %v448 = vmul.f32 %v435, %v387
        %v449 = vmul.f32 %v439, %v386
        %v450 = vmul.f32 %v439, %v387
        %v451 = vmul.f32 %v443, %v386
        %v452 = vmul.f32 %v443, %v387
        %v453 = vlaneseq
        %v454 = vshrl.u32 %v453, 7
        %v455 = vsub.s32 0, %v454
        %v456 = vrot.slane %v350, %v455
        %v457 = vlaneseq
        %v458 = vshrl.u32 %v457, 7
        %v459 = vsub.s32 0, %v458
        %v460 = vrot.slane %v357, %v459
        %v461 = vlaneseq
        %v462 = vshrl.u32 %v461, 7
        %v463 = vsub.s32 0, %v462
        %v464 = vrot.slane %v358, %v463
        %v465 = vlaneseq
        %v466 = vshrl.u32 %v465, 7
        %v467 = vsub.s32 0, %v466
        %v468 = vrot.slane %v359, %v467
        %469 = vset.pattern.permute.xlu0 0
        %470 = vperm.xlu0 %469, %v456
        %v471 = vpop.permute.xlu0 %470
        %473 = vset.pattern.permute.xlu0 0
        %474 = vperm.xlu0 %473, %v460
        %v475 = vpop.permute.xlu0 %474
        %477 = vset.pattern.permute.xlu0 0
        %478 = vperm.xlu0 %477, %v464
        %v479 = vpop.permute.xlu0 %478
        %481 = vset.pattern.permute.xlu0 0
        %482 = vperm.xlu0 %481, %v468
        %v483 = vpop.permute.xlu0 %482
        %v485 = vadd.f32 %v471, %v445
        %v486 = vadd.f32 %v471, %v446
        %v487 = vadd.f32 %v475, %v447
        %v488 = vadd.f32 %v475, %v448
        %v489 = vadd.f32 %v479, %v449
        %v490 = vadd.f32 %v479, %v450
        %v491 = vadd.f32 %v483, %v451
        %v492 = vadd.f32 %v483, %v452
        %493 = vset.pattern.permute.xlu0 1
        %494 = vperm.xlu0 %493, %v331
        %v495 = vpop.permute.xlu0 %494
        %v497 = vlaneseq
        %v498 = vshrl.u32 %v497, 7
        %v499 = vsub.s32 1, %v498
        %v500 = vrot.slane %v332, %v499
        %v501 = vlaneseq
        %v502 = vshrl.u32 %v501, 7
        %v503 = vsub.s32 3, %v502
        %v504 = vrot.slane %v332, %v503
        %v507 = vlaneseq
        %v508 = vshrl.u32 %v507, 7
        %v509 = vsub.s32 1, %v508
        %v510 = vrot.slane %v500, %v509
        %v511 = vlaneseq
        %v512 = vshrl.u32 %v511, 7
        %v513 = vsub.s32 1, %v512
        %v514 = vrot.slane %v504, %v513
        %v515 = vadd.f32 %v495, %v510
        %v516 = vadd.f32 %v495, %v514
        %v517 = vmax.f32 %v515, 0.0
        %v518 = vmax.f32 %v516, 0.0
        %519 = vset.pattern.permute.xlu0 1
        %520 = vperm.xlu0 %519, %v416
        %v521 = vpop.permute.xlu0 %520
        %523 = vset.pattern.permute.xlu0 1
        %524 = vperm.xlu0 %523, %v420
        %v525 = vpop.permute.xlu0 %524
        %527 = vset.pattern.permute.xlu0 1
        %528 = vperm.xlu0 %527, %v424
        %v529 = vpop.permute.xlu0 %528
        %531 = vset.pattern.permute.xlu0 1
        %532 = vperm.xlu0 %531, %v428
        %v533 = vpop.permute.xlu0 %532
        %v535 = vmul.f32 %v521, %v517
        %v536 = vmul.f32 %v521, %v518
        %v537 = vmul.f32 %v525, %v517
        %v538 = vmul.f32 %v525, %v518
        %v539 = vmul.f32 %v529, %v517
        %v540 = vmul.f32 %v529, %v518
        %v541 = vmul.f32 %v533, %v517
        %v542 = vmul.f32 %v533, %v518
        %v543 = vadd.f32 %v485, %v535
        %v544 = vadd.f32 %v486, %v536
        %v545 = vadd.f32 %v487, %v537
        %v546 = vadd.f32 %v488, %v538
        %v547 = vadd.f32 %v489, %v539
        %v548 = vadd.f32 %v490, %v540
        %v549 = vadd.f32 %v491, %v541
        %v550 = vadd.f32 %v492, %v542
        %v551 = vxor.u32 %v543, 2147483648
        %v552 = vxor.u32 %v544, 2147483648
        %v553 = vxor.u32 %v545, 2147483648
        %v554 = vxor.u32 %v546, 2147483648
        %v555 = vxor.u32 %v547, 2147483648
        %v556 = vxor.u32 %v548, 2147483648
        %v557 = vxor.u32 %v549, 2147483648
        %v558 = vxor.u32 %v550, 2147483648
        %v559 = vmul.f32 %v551, 1.442695
        %v560 = vpow.pop %v559
        %v561 = vmul.f32 %v552, 1.442695
        %v562 = vpow.pop %v561
        %v563 = vmul.f32 %v553, 1.442695
        %v564 = vpow.pop %v563
        %v565 = vmul.f32 %v554, 1.442695
        %v566 = vpow.pop %v565
        %v567 = vmul.f32 %v555, 1.442695
        %v568 = vpow.pop %v567
        %v569 = vmul.f32 %v556, 1.442695
        %v570 = vpow.pop %v569
        %v571 = vmul.f32 %v557, 1.442695
        %v572 = vpow.pop %v571
        %v573 = vmul.f32 %v558, 1.442695
        %v574 = vpow.pop %v573
        %v575 = vadd.f32 %v560, 1.0
        %v576 = vadd.f32 %v562, 1.0
        %v577 = vadd.f32 %v564, 1.0
        %v578 = vadd.f32 %v566, 1.0
        %v579 = vadd.f32 %v568, 1.0
        %v580 = vadd.f32 %v570, 1.0
        %v581 = vadd.f32 %v572, 1.0
        %v582 = vadd.f32 %v574, 1.0
        %v583 = vrcp.pop %v575
        %v584 = vmul.f32 1.0, %v583
        %v585 = vrcp.pop %v576
        %v586 = vmul.f32 1.0, %v585
        %v587 = vrcp.pop %v577
        %v588 = vmul.f32 1.0, %v587
        %v589 = vrcp.pop %v578
        %v590 = vmul.f32 1.0, %v589
        %v591 = vrcp.pop %v579
        %v592 = vmul.f32 1.0, %v591
        %v593 = vrcp.pop %v580
        %v594 = vmul.f32 1.0, %v593
        %v595 = vrcp.pop %v581
        %v596 = vmul.f32 1.0, %v595
        %v597 = vrcp.pop %v582
        %v598 = vmul.f32 1.0, %v597
        %v599 = vld [vmem:[%s273] sm:$0xff]
        %v600 = vld [vmem:[%s273 + $0x8] sm:$0xff]
        %v601 = vld [vmem:[%s273 + $0x10] sm:$0xff]
        %v602 = vld [vmem:[%s273 + $0x18] sm:$0xff]
        %v603 = vld [vmem:[%s273 + $0x20] sm:$0xff]
        %v604 = vld [vmem:[%s273 + $0x28] sm:$0xff]
        %v605 = vld [vmem:[%s273 + $0x30] sm:$0xff]
        %v606 = vld [vmem:[%s273 + $0x38] sm:$0xff]
        %v607 = vmul.f32 %v599, %v584
        %v608 = vmul.f32 %v600, %v586
        %v609 = vmul.f32 %v601, %v588
        %v610 = vmul.f32 %v602, %v590
        %v611 = vmul.f32 %v603, %v592
        %v612 = vmul.f32 %v604, %v594
        %v613 = vmul.f32 %v605, %v596
        %v614 = vmul.f32 %v606, %v598
        %615 = vst [vmem:[%s312] sm:$0xff] %v607
        %616 = vst [vmem:[%s312 + $0x8] sm:$0xff] %v608
        %617 = vst [vmem:[%s312 + $0x10] sm:$0xff] %v609
        %618 = vst [vmem:[%s312 + $0x18] sm:$0xff] %v610
        %619 = vst [vmem:[%s312 + $0x20] sm:$0xff] %v611
        %620 = vst [vmem:[%s312 + $0x28] sm:$0xff] %v612
        %621 = vst [vmem:[%s312 + $0x30] sm:$0xff] %v613
        %622 = vst [vmem:[%s312 + $0x38] sm:$0xff] %v614
        %s623 = sand.u32 %s179, 1
        %s624 = scalar_lea.sflag [#allocation4], %s623
        %s625 = sand.u32 %s179, 1
        %s626 = smul.addr %s625, 64
        %s627 = scalar_lea.vmem [#allocation5], %s626
        // Predicated region
        $region45: #{tpu_custom_call.1} parent=39 // pred_check
          %p628 = pneg %p189
        $region46: #{tpu_custom_call.1} parent=39 // pred_check_branch
          %630 = sbr.rel (%p628) target = $region48
        $region47: #{tpu_custom_call.1} parent=39 // pred_region
          %s631 = smul.u32 2, %s29
          %s633 = ssub.s32 1024, 1024
          %634 = vsyncadd %s624, %s633
          %s635 = smul.addr %s28, 2
          %s636 = sadd.s32 %s631, %s635
          %s637 = smul.addr %s27, 8
          %s638 = sadd.s32 %s636, %s637
          %s639 = smul.addr %s638, 128
          %s640 = scalar_lea.hbm %s5, %s639
          %s641 = sshll.u32 %s627, 4
          %s642 = int_to_ptr.vmem [resolvable:$true] %s641
          %647 = dma.vmem_to_hbm [thread:$0]  %s642, 1024, %s640, %s624, 256, 256, 16
        $region48: #{tpu_custom_call.1} parent=39 // pred_fallthru
          _
      $region40: #{tpu_custom_call.1} parent=5 // pred_fallthru
        _
      %p648 = scmp.le.s32.totalorder 2, %s17
      // Predicated region
      $region49: #{tpu_custom_call.1} parent=5 // pred_check
        %p649 = pneg %p648
      $region50: #{tpu_custom_call.1} parent=5 // pred_check_branch
        %651 = sbr.rel (%p649) target = $region52
      $region51: #{tpu_custom_call.1} parent=5 // pred_region
        %s652 = ssub.s32 %s17, 2
        // Predicated region
        $region53: #{tpu_custom_call.1} parent=51 // pred_check
          %p653 = pneg %p195
        $region54: #{tpu_custom_call.1} parent=51 // pred_check_branch
          %655 = sbr.rel (%p653) target = $region56
        $region55: #{tpu_custom_call.1} parent=51 // pred_region
          %s656 = sand.u32 %s180, 1
          %s657 = scalar_lea.sflag [#allocation4], %s656
          %s658 = sand.u32 %s180, 1
          %s659 = smul.addr %s658, 64
          %s660 = scalar_lea.vmem [#allocation5], %s659
          %661 = dma.done %s657, 1024
        $region56: #{tpu_custom_call.1} parent=51 // pred_fallthru
          _
      $region52: #{tpu_custom_call.1} parent=5 // pred_fallthru
        _
    $region6: #{tpu_custom_call.1} parent=1 // loop_footer
      %s21 = sadd.s32 1, %s17
    $region7: #{tpu_custom_call.1} parent=1 // loop_footer_branch
      %16 = sbr.rel target = $region3
    $region8: #{tpu_custom_call.1} parent=1 // loop_exit
      _
    %662 = vsyncpa [#allocation3], 1
    %s663 = scalar_lea.sflag [#allocation3], 1
    %664 = vsyncpa %s663, 1
    %665 = vsyncpa [#allocation4], 1
    %s666 = scalar_lea.sflag [#allocation4], 1
    %667 = vsyncpa %s666, 1

</llo_original>
